<compile_context>
chip_gen: v7x
topology: tpu7x:2x2x1
jax: 0.10.0
libtpu: 0.0.40
codegen_flags: <defaults>
</compile_context>

<pallas_src>
import jax
import jax.numpy as jnp
from jax import lax
from jax.experimental import pallas as pl
from jax.experimental.pallas import tpu as pltpu


def _pairwise_contact_kernel(xr_ref, xf_ref, wp_ref, b_ref, o_ref):
    # xr_ref: [1, TL, H]  row tile of this batch element
    # xf_ref: [1, L,  H]  full sequence for this batch element (resident across row tiles)
    # wp_ref: [2, H]      product-half of the linear weight (resident)
    # b_ref : [1, 2]      bias, SMEM scalars (resident)
    # o_ref : [1, 2, TL, L]  channel-first, lane-dense output block
    xr = xr_ref[0]                      # [TL, H]
    xf = xf_ref[0]                      # [L,  H]
    for c in range(2):                  # static unroll over the 2 contact logits
        xc = xr * wp_ref[c:c + 1, :]    # scale row features by channel-c weights
        # (x_i * w_c) . x_j  -> [TL, L] Gram-style matmul on the MXU, f32 accumulate
        a = lax.dot_general(
            xc, xf,
            dimension_numbers=(((1,), (1,)), ((), ())),
            preferred_element_type=jnp.float32,
        )
        # diff-half and explicit (P + P^T)/2 cancel exactly; only the bias remains.
        o_ref[0, c, :, :] = (a + b_ref[0, c]).astype(o_ref.dtype)


def _symmetrized_logits(inputs, weight, bias):
    """Pallas call producing the symmetrized (un-sliced) logits as [B, 2, L, L] f32."""
    B, L, H = inputs.shape
    wp = weight[:, :H].astype(jnp.float32)        # only the product half is needed
    b2d = bias.reshape(1, 2).astype(jnp.float32)
    x = inputs.astype(jnp.float32)

    # Row tile: 128 when L tiles evenly, otherwise a single full-L row block.
    TL = 128 if (L % 128 == 0) else L
    grid = (B, L // TL)

    flops = 2 * 2 * B * L * L * H                      # 2 channels, MAC = 2 flops
    bytes_accessed = 4 * (2 * B * L * H + 2 * B * L * L + 2 * H + 2)

    return pl.pallas_call(
        _pairwise_contact_kernel,
        out_shape=jax.ShapeDtypeStruct((B, 2, L, L), jnp.float32),
        grid_spec=pltpu.PrefetchScalarGridSpec(
            num_scalar_prefetch=0,
            grid=grid,
            in_specs=[
                pl.BlockSpec((1, TL, H), lambda bi, ri: (bi, ri, 0)),   # row tile of x
                pl.BlockSpec((1, L, H), lambda bi, ri: (bi, 0, 0)),     # full x (resident over ri)
                pl.BlockSpec((2, H), lambda bi, ri: (0, 0)),            # Wp (resident)
                pl.BlockSpec(memory_space=pltpu.MemorySpace.SMEM),      # bias scalars
            ],
            out_specs=pl.BlockSpec((1, 2, TL, L), lambda bi, ri: (bi, 0, ri, 0)),
        ),
        compiler_params=pltpu.CompilerParams(
            dimension_semantics=("parallel", "parallel"),
        ),
        cost_estimate=pl.CostEstimate(
            flops=flops, transcendentals=0, bytes_accessed=bytes_accessed,
        ),
    )(x, x, wp, b2d)


def _cross_entropy_ignore(prediction, targets, ignore_index):
    logits = prediction.reshape(-1, 2).astype(jnp.float32)
    tgt = targets.reshape(-1)
    valid = tgt != ignore_index
    logp = jax.nn.log_softmax(logits, axis=-1)
    safe = jnp.where(valid, tgt, 0)
    nll = -jnp.take_along_axis(logp, safe[:, None], axis=-1)[:, 0]
    denom = jnp.maximum(jnp.sum(valid.astype(jnp.float32)), 1.0)
    return jnp.sum(jnp.where(valid, nll, 0.0)) / denom


def _precision_at_l5(sequence_lengths, prediction, labels, ignore_index):
    # Mirrors the torch per-sequence loop; sequence_lengths must be concrete
    # (dynamic top-k sizes have no traced equivalent), matching the reference loop.
    B, Lp, _, _ = prediction.shape
    valid_mask = labels != ignore_index
    seqpos = jnp.arange(Lp)
    x_ind, y_ind = jnp.meshgrid(seqpos, seqpos, indexing="ij")
    valid_mask = valid_mask & ((y_ind - x_ind) >= 6)[None]
    probs = jax.nn.softmax(prediction.astype(jnp.float32), axis=3)[:, :, :, 1]
    valid_f = valid_mask.astype(probs.dtype)

    correct = jnp.float32(0.0)
    total = 0
    for b in range(B):
        length = int(sequence_lengths[b])
        k = length // 5
        if k <= 0:
            continue
        masked_prob = (probs[b] * valid_f[b]).reshape(-1)
        _, idx = lax.top_k(masked_prob, k)
        selected = labels[b].reshape(-1)[idx]
        correct = correct + jnp.sum(selected).astype(jnp.float32)
        total += k
    return correct / total


def pairwise_contact_prediction_head(inputs, sequence_lengths, params,
                                     targets=None, ignore_index=-100):
    """Forward pass of PairwiseContactPredictionHead (dropout = inference no-op).

    inputs: [B, L, H] float; params: {"weight": [2, 2H], "bias": [2]}.
    Returns (prediction,) or ((loss, metrics), prediction) if targets is given.
    """
    sym = _symmetrized_logits(inputs, params["weight"], params["bias"])   # [B, 2, L, L]
    # channel-first -> channel-last, drop BOS/EOS rows & cols (== prediction[:, 1:-1, 1:-1])
    prediction = jnp.transpose(sym, (0, 2, 3, 1))[:, 1:-1, 1:-1, :]
    outputs = (prediction,)
    if targets is not None:
        loss = _cross_entropy_ignore(prediction, targets, ignore_index)
        metrics = {
            "precision_at_l5": _precision_at_l5(
                sequence_lengths, prediction, targets, ignore_index)
        }
        outputs = ((loss, metrics),) + outputs
    return outputs


def _reference_forward(inputs, weight, bias):
    """Literal pure-JAX port of the PyTorch forward (eval mode), for self-check."""
    prod = inputs[:, :, None, :] * inputs[:, None, :, :]
    diff = inputs[:, :, None, :] - inputs[:, None, :, :]
    feats = jnp.concatenate([prod, diff], axis=-1)                # [B, L, L, 2H]
    pred = feats @ weight.T + bias                                # [B, L, L, 2]
    pred = (pred + jnp.swapaxes(pred, 1, 2)) / 2
    return pred[:, 1:-1, 1:-1, :]


if __name__ == "__main__":
    B, L, H = 2, 16, 32
    key = jax.random.PRNGKey(0)
    kx, kw, kb, kt1, kt2 = jax.random.split(key, 5)

    inputs = jax.random.normal(kx, (B, L, H), jnp.float32)
    bound = (2.0 * H) ** -0.5                       # nn.Linear default init bound
    weight = jax.random.uniform(kw, (2, 2 * H), jnp.float32, -bound, bound)
    bias = jax.random.uniform(kb, (2,), jnp.float32, -bound, bound)
    params = {"weight": weight, "bias": bias}
    sequence_lengths = jnp.array([14, 12], dtype=jnp.int32)

    # --- logits-only path -----------------------------------------------------
    (prediction,) = pairwise_contact_prediction_head(inputs, sequence_lengths, params)
    jax.block_until_ready(prediction)
    assert prediction.shape == (B, L - 2, L - 2, 2)

    # numerics vs the literal (pairwise-feature-materializing) reference
    ref = _reference_forward(inputs, weight, bias)
    max_err = float(jnp.max(jnp.abs(prediction - ref)))
    assert max_err < 1e-4, f"mismatch vs reference: {max_err}"

    # --- loss + metric path ---------------------------------------------------
    Lp = L - 2
    targets = jax.random.randint(kt1, (B, Lp, Lp), 0, 2, dtype=jnp.int32)
    drop = jax.random.uniform(kt2, (B, Lp, Lp)) < 0.2
    targets = jnp.where(drop, -100, targets)

    (loss, metrics), prediction2 = pairwise_contact_prediction_head(
        inputs, sequence_lengths, params, targets=targets)
    jax.block_until_ready((loss, metrics["precision_at_l5"], prediction2))

    print("KERNEL_OK")
</pallas_src>

<mosaic_0001>
module attributes {stable_mosaic.version = 11 : i64} {
  func.func @_pairwise_contact_kernel(%arg0: i32, %arg1: i32, %arg2: memref<1x16x32xf32, #tpu.memory_space<vmem>>, %arg3: memref<1x16x32xf32, #tpu.memory_space<vmem>>, %arg4: memref<2x32xf32, #tpu.memory_space<vmem>>, %arg5: memref<1x2xf32, #tpu.memory_space<smem>>, %arg6: memref<1x2x16x16xf32, #tpu.memory_space<vmem>>) attributes {dimension_semantics = [#tpu.dimension_semantics<parallel>, #tpu.dimension_semantics<parallel>], iteration_bounds = array<i64: 2, 1>, scalar_prefetch = 0 : i64, scratch_operands = 0 : i64, tpu.core_type = #tpu.core_type<tc>, window_params = [{transform_indices = @transform_0, window_bounds = array<i64: 1, 16, 32>}, {transform_indices = @transform_1, window_bounds = array<i64: 1, 16, 32>}, {pipeline_mode = #tpu.pipeline_mode<synchronous>, transform_indices = @transform_2, window_bounds = array<i64: 2, 32>}, {transform_indices = @transform_3, window_bounds = array<i64: 1, 2>}, {transform_indices = @transform_4, window_bounds = array<i64: 1, 2, 16, 16>}]} {
    %c0 = arith.constant 0 : index
    %c0_0 = arith.constant 0 : index
    %c0_1 = arith.constant 0 : index
    %0 = vector.load %arg2[%c0, %c0_0, %c0_1] : memref<1x16x32xf32, #tpu.memory_space<vmem>>, vector<1x16x32xf32>
    %1 = vector.shape_cast %0 : vector<1x16x32xf32> to vector<16x32xf32>
    %c0_2 = arith.constant 0 : index
    %c0_3 = arith.constant 0 : index
    %c0_4 = arith.constant 0 : index
    %2 = vector.load %arg3[%c0_2, %c0_3, %c0_4] : memref<1x16x32xf32, #tpu.memory_space<vmem>>, vector<1x16x32xf32>
    %3 = vector.shape_cast %2 : vector<1x16x32xf32> to vector<16x32xf32>
    %c0_5 = arith.constant 0 : index
    %c0_6 = arith.constant 0 : index
    %4 = vector.load %arg4[%c0_5, %c0_6] : memref<2x32xf32, #tpu.memory_space<vmem>>, vector<1x32xf32>
    %5 = vector.broadcast %4 : vector<1x32xf32> to vector<16x32xf32>
    %6 = arith.mulf %1, %5 : vector<16x32xf32>
    %cst = arith.constant dense<0.000000e+00> : vector<16x16xf32>
    %7 = tpu.matmul %6, %3, %cst {dimension_numbers = #tpu.dot_dimension_numbers<[1], [1], [0], [0], [0, 0, 1, 0], [], []>} : vector<16x32xf32>, vector<16x32xf32>, vector<16x16xf32> -> vector<16x16xf32>
    %c0_7 = arith.constant 0 : index
    %c0_8 = arith.constant 0 : index
    %8 = memref.load %arg5[%c0_7, %c0_8] : memref<1x2xf32, #tpu.memory_space<smem>>
    %9 = vector.broadcast %8 : f32 to vector<16x16xf32>
    %10 = arith.addf %7, %9 : vector<16x16xf32>
    %c0_9 = arith.constant 0 : index
    %c0_10 = arith.constant 0 : index
    %c0_11 = arith.constant 0 : index
    %c0_12 = arith.constant 0 : index
    %11 = vector.load %arg6[%c0_9, %c0_10, %c0_11, %c0_12] : memref<1x2x16x16xf32, #tpu.memory_space<vmem>>, vector<1x1x16x16xf32>
    %12 = vector.shape_cast %11 : vector<1x1x16x16xf32> to vector<16x16xf32>
    %13 = vector.shape_cast %10 : vector<16x16xf32> to vector<1x1x16x16xf32>
    tpu.vector_store %arg6[%c0_9, %c0_10, %c0_11, %c0_12], %13 {strides = array<i32>} : memref<1x2x16x16xf32, #tpu.memory_space<vmem>>, vector<1x1x16x16xf32>,
    %c1 = arith.constant 1 : index
    %c0_13 = arith.constant 0 : index
    %14 = vector.load %arg4[%c1, %c0_13] : memref<2x32xf32, #tpu.memory_space<vmem>>, vector<1x32xf32>
    %15 = vector.broadcast %14 : vector<1x32xf32> to vector<16x32xf32>
    %16 = arith.mulf %1, %15 : vector<16x32xf32>
    %cst_14 = arith.constant dense<0.000000e+00> : vector<16x16xf32>
    %17 = tpu.matmul %16, %3, %cst_14 {dimension_numbers = #tpu.dot_dimension_numbers<[1], [1], [0], [0], [0, 0, 1, 0], [], []>} : vector<16x32xf32>, vector<16x32xf32>, vector<16x16xf32> -> vector<16x16xf32>
    %c0_15 = arith.constant 0 : index
    %c1_16 = arith.constant 1 : index
    %18 = memref.load %arg5[%c0_15, %c1_16] : memref<1x2xf32, #tpu.memory_space<smem>>
    %19 = vector.broadcast %18 : f32 to vector<16x16xf32>
    %20 = arith.addf %17, %19 : vector<16x16xf32>
    %c0_17 = arith.constant 0 : index
    %c1_18 = arith.constant 1 : index
    %c0_19 = arith.constant 0 : index
    %c0_20 = arith.constant 0 : index
    %21 = vector.load %arg6[%c0_17, %c1_18, %c0_19, %c0_20] : memref<1x2x16x16xf32, #tpu.memory_space<vmem>>, vector<1x1x16x16xf32>
    %22 = vector.shape_cast %21 : vector<1x1x16x16xf32> to vector<16x16xf32>
    %23 = vector.shape_cast %20 : vector<16x16xf32> to vector<1x1x16x16xf32>
    tpu.vector_store %arg6[%c0_17, %c1_18, %c0_19, %c0_20], %23 {strides = array<i32>} : memref<1x2x16x16xf32, #tpu.memory_space<vmem>>, vector<1x1x16x16xf32>,
    return
  }
  func.func @transform_0(%arg0: i32, %arg1: i32) -> (i32, i32, i32) {
    %c0_i32 = arith.constant 0 : i32
    %c0_i32_0 = arith.constant 0 : i32
    return %arg0, %arg1, %c0_i32 : i32, i32, i32
  }
  func.func @transform_1(%arg0: i32, %arg1: i32) -> (i32, i32, i32) {
    %c0_i32 = arith.constant 0 : i32
    %c0_i32_0 = arith.constant 0 : i32
    %c0_i32_1 = arith.constant 0 : i32
    return %arg0, %c0_i32, %c0_i32_0 : i32, i32, i32
  }
  func.func @transform_2(%arg0: i32, %arg1: i32) -> (i32, i32) {
    %c0_i32 = arith.constant 0 : i32
    %c0_i32_0 = arith.constant 0 : i32
    %c0_i32_1 = arith.constant 0 : i32
    return %c0_i32, %c0_i32_0 : i32, i32
  }
  func.func @transform_3(%arg0: i32, %arg1: i32) -> (i32, i32) {
    %c0_i32 = arith.constant 0 : i32
    %c0_i32_0 = arith.constant 0 : i32
    %c0_i32_1 = arith.constant 0 : i32
    return %c0_i32, %c0_i32_0 : i32, i32
  }
  func.func @transform_4(%arg0: i32, %arg1: i32) -> (i32, i32, i32, i32) {
    %c0_i32 = arith.constant 0 : i32
    %c0_i32_0 = arith.constant 0 : i32
    %c0_i32_1 = arith.constant 0 : i32
    return %arg0, %c0_i32, %arg1, %c0_i32_0 : i32, i32, i32, i32
  }
}

</mosaic_0001>

<llo_original>
// kernel: tpu_custom_call.1
$region0: #{tpu_custom_call.1}
  #allocation0 [shape = 'u32[]', space=smem, size = 0x4, offset = 0x4, fixed_abs, tag = 'smem constant byte address 0x4 - core index']
  #allocation1 [shape = 'u32[144,128]{1,0:T(1,128)}', space=vmem, size = 0x12000, scoped, tag = 'internal scratch']
  %s0 = inlined_call_operand.hbm [shape: f32[2,16,32], index: 0, kind: input, shape index: {}]
  %s1 = inlined_call_operand.hbm [shape: f32[2,16,32], index: 1, kind: input, shape index: {}]
  %s2 = inlined_call_operand.vmem [shape: f32[2,32], index: 2, kind: input, shape index: {}]
  %s3 = inlined_call_operand.vmem [shape: f32[1,2], index: 3, kind: input, shape index: {}]
  %s4 = inlined_call_operand.hbm [shape: f32[2,2,16,16], index: 4, kind: output, shape index: {}]
  %s5 = sld [smem:[#allocation0]]
  $region61: #{tpu_custom_call.1} parent=0
    _
  %s7 = ssub.s32 1, %s5
  %s8 = scalar_select 0, %s7, %s5
  $region1: #{tpu_custom_call.1} parent=0
    #allocation2 [shape = 'u8[16384]{0}', space=vmem, size = 0x4000, scoped, tag = 'input window, operand 0']
    #allocation3 [shape = 's32[2]{0}', space=sflag, size = 0x8, scoped, tag = 'scoped memory for tpu_custom_call.1']
    #allocation4 [shape = 's32[2]{0}', space=sflag, size = 0x8, scoped, tag = 'scoped memory for tpu_custom_call.1']
    #allocation5 [shape = 's32[2]{0}', space=sflag, size = 0x8, scoped, tag = 'scoped memory for tpu_custom_call.1']
    #allocation6 [shape = 'u8[16384]{0}', space=vmem, size = 0x4000, scoped, tag = 'input window, operand 1']
    #allocation7 [shape = 's32[2]{0}', space=sflag, size = 0x8, scoped, tag = 'scoped memory for tpu_custom_call.1']
    #allocation8 [shape = 'u8[512]{0}', space=smem, size = 0x200, scoped, tag = 'input window, operand 3, single buffered']
    #allocation9 [shape = 'u8[32768]{0}', space=vmem, size = 0x8000, scoped, tag = 'output window, operand 0']
    %9 = vsyncpa [#allocation3], 0
    %s10 = scalar_lea.sflag [#allocation3], 1
    %11 = vsyncpa %s10, 0
    %12 = vsyncpa [#allocation7], 0
    %s13 = scalar_lea.sflag [#allocation7], 1
    %14 = vsyncpa %s13, 0
    %15 = vsyncpa [#allocation5], 0
    %16 = vsyncpa [#allocation4], 0
    %s17 = scalar_lea.sflag [#allocation4], 1
    %18 = vsyncpa %s17, 0
    loop: start=0, step=1, limit=4
    $region2: #{tpu_custom_call.1} parent=1 // loop_pre_header
      _
    $region3: #{tpu_custom_call.1} parent=1 // loop_header
      %s20 = sphi 0, %s24
      %p21 = scmp.ge.s32.totalorder %s20, 4
      %s27 = sphi 0, %s39
      %s28 = sphi 0, %s35
      %s29 = sphi 0, %s27
      %s30 = sphi 0, %s28
      %s31 = sphi 0, %s29
      %s32 = sphi 0, %s30
      %s44 = sphi 0, %s46
      %s47 = sphi 0, %s44
      %s48 = sphi 0, %s47
      %s64 = sphi 0, %s48
      %s70 = sphi 0, %s72
      %s73 = sphi 0, %s70
      %s74 = sphi 0, %s73
      %s90 = sphi 0, %s74
      %s94 = sphi 0, %s94
      %s96 = sphi 0, %s94
      %s97 = sphi 0, %s96
      %s111 = sphi 0, %s97
      %s115 = sphi 0, %s115
      %s117 = sphi 0, %s115
      %s118 = sphi 0, %s117
      %s132 = sphi 0, %s118
      %s140 = sphi 0, %s142
      %s143 = sphi 0, %s140
      %s144 = sphi 0, %s143
      %s160 = sphi 0, %s144
    $region4: #{tpu_custom_call.1} parent=1 // loop_header_branch
      %23 = sbr.rel (%p21) target = $region8
    $region5: #{tpu_custom_call.1} parent=1 // loop_body
      %s25 = ssub.s32 %s20, 1
      %s26 = ssub.s32 %s20, 2
      %s33 = sadd.s32 1, %s28
      %p34 = scmp.ge.s32.totalorder %s33, 1
      %s35 = scalar_select %p34, 0, %s33
      %s36 = sadd.s32 1, %s27
      %s37 = scalar_select %p34, %s36, %s27
      %p38 = scmp.ge.s32.totalorder %s37, 2
      %s39 = scalar_select %p38, 0, %s37
      %s40 = ssub.s32 %s27, %s39
      %s41 = ssub.s32 %s28, %s35
      %s42 = sor.u32 %s40, %s41
      %p43 = scmp.eq.s32.totalorder %s42, 0
      %s45 = sadd.s32 %s44, 1
      %s46 = scalar_select %p43, %s44, %s45
      %p49 = pneg %p43
      %p50 = scmp.eq.s32.totalorder %s20, 1
      %p51 = por %p49, %p50
      %p52 = scmp.ne.s32.totalorder %s44, %s47
      %p53 = scmp.eq.s32.totalorder %s20, 0
      %p54 = por %p52, %p53
      %p55 = scmp.ne.s32.totalorder %s44, %s47
      %p56 = scmp.eq.s32.totalorder %s25, 1
      %p57 = por %p55, %p56
      %p58 = scmp.ne.s32.totalorder %s47, %s48
      %p59 = scmp.eq.s32.totalorder %s25, 0
      %p60 = por %p58, %p59
      %p61 = scmp.ne.s32.totalorder %s47, %s48
      %p62 = scmp.eq.s32.totalorder %s26, 1
      %p63 = por %p61, %p62
      %p65 = scmp.ne.s32.totalorder %s48, %s64
      %p66 = scmp.eq.s32.totalorder %s26, 0
      %p67 = por %p65, %p66
      %s68 = ssub.s32 %s27, %s39
      %p69 = scmp.eq.s32.totalorder %s68, 0
      %s71 = sadd.s32 %s70, 1
      %s72 = scalar_select %p69, %s70, %s71
      %p75 = pneg %p69
      %p76 = scmp.eq.s32.totalorder %s20, 1
      %p77 = por %p75, %p76
      %p78 = scmp.ne.s32.totalorder %s70, %s73
      %p79 = scmp.eq.s32.totalorder %s20, 0
      %p80 = por %p78, %p79
      %p81 = scmp.ne.s32.totalorder %s70, %s73
      %p82 = scmp.eq.s32.totalorder %s25, 1
      %p83 = por %p81, %p82
      %p84 = scmp.ne.s32.totalorder %s73, %s74
      %p85 = scmp.eq.s32.totalorder %s25, 0
      %p86 = por %p84, %p85
      %p87 = scmp.ne.s32.totalorder %s73, %s74
      %p88 = scmp.eq.s32.totalorder %s26, 1
      %p89 = por %p87, %p88
      %p91 = scmp.ne.s32.totalorder %s74, %s90
      %p92 = scmp.eq.s32.totalorder %s26, 0
      %p93 = por %p91, %p92
      %s95 = sadd.s32 %s94, 1
      %p98 = scmp.eq.s32.totalorder %s20, 1
      %p99 = scmp.ne.s32.totalorder %s94, %s96
      %p100 = scmp.eq.s32.totalorder %s20, 0
      %p101 = por %p99, %p100
      %p102 = scmp.ne.s32.totalorder %s94, %s96
      %p103 = scmp.eq.s32.totalorder %s25, 1
      %p104 = por %p102, %p103
      %p105 = scmp.ne.s32.totalorder %s96, %s97
      %p106 = scmp.eq.s32.totalorder %s25, 0
      %p107 = por %p105, %p106
      %p108 = scmp.ne.s32.totalorder %s96, %s97
      %p109 = scmp.eq.s32.totalorder %s26, 1
      %p110 = por %p108, %p109
      %p112 = scmp.ne.s32.totalorder %s97, %s111
      %p113 = scmp.eq.s32.totalorder %s26, 0
      %p114 = por %p112, %p113
      %s116 = sadd.s32 %s115, 1
      %p119 = scmp.eq.s32.totalorder %s20, 1
      %p120 = scmp.ne.s32.totalorder %s115, %s117
      %p121 = scmp.eq.s32.totalorder %s20, 0
      %p122 = por %p120, %p121
      %p123 = scmp.ne.s32.totalorder %s115, %s117
      %p124 = scmp.eq.s32.totalorder %s25, 1
      %p125 = por %p123, %p124
      %p126 = scmp.ne.s32.totalorder %s117, %s118
      %p127 = scmp.eq.s32.totalorder %s25, 0
      %p128 = por %p126, %p127
      %p129 = scmp.ne.s32.totalorder %s117, %s118
      %p130 = scmp.eq.s32.totalorder %s26, 1
      %p131 = por %p129, %p130
      %p133 = scmp.ne.s32.totalorder %s118, %s132
      %p134 = scmp.eq.s32.totalorder %s26, 0
      %p135 = por %p133, %p134
      %s136 = ssub.s32 %s27, %s39
      %s137 = ssub.s32 %s28, %s35
      %s138 = sor.u32 %s136, %s137
      %p139 = scmp.eq.s32.totalorder %s138, 0
      %s141 = sadd.s32 %s140, 1
      %s142 = scalar_select %p139, %s140, %s141
      %p145 = pneg %p139
      %p146 = scmp.eq.s32.totalorder %s20, 1
      %p147 = por %p145, %p146
      %p148 = scmp.ne.s32.totalorder %s140, %s143
      %p149 = scmp.eq.s32.totalorder %s20, 0
      %p150 = por %p148, %p149
      %p151 = scmp.ne.s32.totalorder %s140, %s143
      %p152 = scmp.eq.s32.totalorder %s25, 1
      %p153 = por %p151, %p152
      %p154 = scmp.ne.s32.totalorder %s143, %s144
      %p155 = scmp.eq.s32.totalorder %s25, 0
      %p156 = por %p154, %p155
      %p157 = scmp.ne.s32.totalorder %s143, %s144
      %p158 = scmp.eq.s32.totalorder %s26, 1
      %p159 = por %p157, %p158
      %p161 = scmp.ne.s32.totalorder %s144, %s160
      %p162 = scmp.eq.s32.totalorder %s26, 0
      %p163 = por %p161, %p162
      %p164 = scmp.le.s32.totalorder 1, %s20
      %p165 = scmp.lt.s32.totalorder %s20, 3
      %p166 = pnand %p164, %p165
      %p167 = pneg %p166
      // Predicated region
      $region9: #{tpu_custom_call.1} parent=5 // pred_check
        _
      $region10: #{tpu_custom_call.1} parent=5 // pred_check_branch
        %169 = sbr.rel (%p166) target = $region12
      $region11: #{tpu_custom_call.1} parent=5 // pred_region
        %s170 = ssub.s32 %s20, 1
        // Predicated region
        $region13: #{tpu_custom_call.1} parent=11 // pred_check
          %p171 = pneg %p107
        $region14: #{tpu_custom_call.1} parent=11 // pred_check_branch
          %173 = sbr.rel (%p171) target = $region16
        $region15: #{tpu_custom_call.1} parent=11 // pred_region
          _
        $region16: #{tpu_custom_call.1} parent=11 // pred_fallthru
          _
        // Predicated region
        $region17: #{tpu_custom_call.1} parent=11 // pred_check
          %p174 = pneg %p128
        $region18: #{tpu_custom_call.1} parent=11 // pred_check_branch
          %176 = sbr.rel (%p174) target = $region20
        $region19: #{tpu_custom_call.1} parent=11 // pred_region
          %s178 = ssub.s32 16, 16
          %179 = vsyncadd [#allocation5], %s178
          %s181 = sshll.u32 %s3, 4
          %s182 = int_to_ptr.vmem [resolvable:$true] %s181
          %184 = dma.vmem_to_smem %s182, 16, [#allocation8], [#allocation5]
        $region20: #{tpu_custom_call.1} parent=11 // pred_fallthru
          _
      $region12: #{tpu_custom_call.1} parent=5 // pred_fallthru
        _
      %p185 = scmp.lt.s32.totalorder %s20, 2
      // Predicated region
      $region21: #{tpu_custom_call.1} parent=5 // pred_check
        %p186 = pneg %p185
      $region22: #{tpu_custom_call.1} parent=5 // pred_check_branch
        %188 = sbr.rel (%p186) target = $region24
      $region23: #{tpu_custom_call.1} parent=5 // pred_region
        // Predicated region
        $region25: #{tpu_custom_call.1} parent=23 // pred_check
          %p189 = pneg %p54
        $region26: #{tpu_custom_call.1} parent=23 // pred_check_branch
          %191 = sbr.rel (%p189) target = $region28
        $region27: #{tpu_custom_call.1} parent=23 // pred_region
          %s192 = sand.u32 %s44, 1
          %s193 = scalar_lea.sflag [#allocation3], %s192
          %s194 = sand.u32 %s44, 1
          %s195 = smul.addr %s194, 16
          %s196 = scalar_lea.vmem [#allocation2], %s195
          %s197 = smul.u32 2, %s28
          %s199 = ssub.s32 256, 256
          %200 = vsyncadd %s193, %s199
          %s201 = smul.addr %s27, 2
          %s202 = sadd.s32 %s197, %s201
          %s203 = smul.addr %s202, 128
          %s204 = scalar_lea.hbm %s0, %s203
          %s205 = sshll.u32 %s196, 4
          %s206 = int_to_ptr.vmem [resolvable:$true] %s205
          %211 = dma.hbm_to_vmem [thread:$0]  %s204, 256, %s206, %s193, 128, 128, 8
        $region28: #{tpu_custom_call.1} parent=23 // pred_fallthru
          _
        // Predicated region
        $region29: #{tpu_custom_call.1} parent=23 // pred_check
          %p212 = pneg %p80
        $region30: #{tpu_custom_call.1} parent=23 // pred_check_branch
          %214 = sbr.rel (%p212) target = $region32
        $region31: #{tpu_custom_call.1} parent=23 // pred_region
          %s215 = sand.u32 %s70, 1
          %s216 = scalar_lea.sflag [#allocation7], %s215
          %s217 = sand.u32 %s70, 1
          %s218 = smul.addr %s217, 16
          %s219 = scalar_lea.vmem [#allocation6], %s218
          %s221 = ssub.s32 256, 256
          %222 = vsyncadd %s216, %s221
          %s223 = smul.addr %s27, 2
          %s224 = smul.addr %s223, 128
          %s225 = scalar_lea.hbm %s1, %s224
          %s226 = sshll.u32 %s219, 4
          %s227 = int_to_ptr.vmem [resolvable:$true] %s226
          %232 = dma.hbm_to_vmem [thread:$0]  %s225, 256, %s227, %s216, 128, 128, 8
        $region32: #{tpu_custom_call.1} parent=23 // pred_fallthru
          _
      $region24: #{tpu_custom_call.1} parent=5 // pred_fallthru
        _
      %p233 = scmp.le.s32.totalorder 1, %s20
      %p234 = scmp.lt.s32.totalorder %s20, 3
      %p235 = pnand %p233, %p234
      %p236 = pneg %p235
      // Predicated region
      $region33: #{tpu_custom_call.1} parent=5 // pred_check
        _
      $region34: #{tpu_custom_call.1} parent=5 // pred_check_branch
        %238 = sbr.rel (%p235) target = $region36
      $region35: #{tpu_custom_call.1} parent=5 // pred_region
        %s239 = ssub.s32 %s20, 1
        %s240 = sand.u32 %s47, 1
        %s241 = scalar_lea.sflag [#allocation3], %s240
        %s242 = sand.u32 %s47, 1
        %s243 = smul.addr %s242, 16
        %s244 = scalar_lea.vmem [#allocation2], %s243
        // Predicated region
        $region37: #{tpu_custom_call.1} parent=35 // pred_check
          %p245 = pneg %p60
        $region38: #{tpu_custom_call.1} parent=35 // pred_check_branch
          %247 = sbr.rel (%p245) target = $region40
        $region39: #{tpu_custom_call.1} parent=35 // pred_region
          %248 = dma.done %s241, 256
        $region40: #{tpu_custom_call.1} parent=35 // pred_fallthru
          _
        %s249 = sand.u32 %s73, 1
        %s250 = scalar_lea.sflag [#allocation7], %s249
        %s251 = sand.u32 %s73, 1
        %s252 = smul.addr %s251, 16
        %s253 = scalar_lea.vmem [#allocation6], %s252
        // Predicated region
        $region41: #{tpu_custom_call.1} parent=35 // pred_check
          %p254 = pneg %p86
        $region42: #{tpu_custom_call.1} parent=35 // pred_check_branch
          %256 = sbr.rel (%p254) target = $region44
        $region43: #{tpu_custom_call.1} parent=35 // pred_region
          %257 = dma.done %s250, 256
        $region44: #{tpu_custom_call.1} parent=35 // pred_fallthru
          _
        // Predicated region
        $region45: #{tpu_custom_call.1} parent=35 // pred_check
          %p258 = pneg %p128
        $region46: #{tpu_custom_call.1} parent=35 // pred_check_branch
          %260 = sbr.rel (%p258) target = $region48
        $region47: #{tpu_custom_call.1} parent=35 // pred_region
          %261 = dma.done [#allocation5], 16
        $region48: #{tpu_custom_call.1} parent=35 // pred_fallthru
          _
        %262 = sfence
        %s263 = sand.u32 %s47, 1
        %s264 = scalar_lea.sflag [#allocation3], %s263
        %s265 = sand.u32 %s47, 1
        %s266 = smul.addr %s265, 16
        %s267 = scalar_lea.vmem [#allocation2], %s266
        %p268 = pneg %p60
        %p269 = pneg %p57
        %s270 = sand.u32 %s73, 1
        %s271 = scalar_lea.sflag [#allocation7], %s270
        %s272 = sand.u32 %s73, 1
        %s273 = smul.addr %s272, 16
        %s274 = scalar_lea.vmem [#allocation6], %s273
        %p275 = pneg %p86
        %p276 = pneg %p83
        %p277 = pneg %p107
        %p278 = pneg %p104
        %p279 = pneg %p128
        %p280 = pneg %p125
        %p281 = pneg %p156
        %p282 = pneg %p153
        %s283 = sand.u32 %s143, 1
        %s284 = scalar_lea.sflag [#allocation4], %s283
        %s285 = sand.u32 %s143, 1
        %s286 = smul.addr %s285, 32
        %s287 = scalar_lea.vmem [#allocation9], %s286
        %s288 = smul.u32 2, %s30
        %s289 = smul.u32 2, %s30
        %v290 = vld [vmem:[%s244] sm:$0xff]
        %v291 = vld [vmem:[%s244 + $0x8] sm:$0xff]
        %v292 = vld [vmem:[%s253] sm:$0xff]
        %v293 = vld [vmem:[%s253 + $0x8] sm:$0xff]
        %v294 = vld [vmem:[%s2] sm:$0x1]
        %v295 = vlaneseq
        %v296 = vshrl.u32 %v295, 7
        %v297 = vsub.s32 0, %v296
        %v298 = vrot.slane %v294, %v297
        %v299 = vmul.f32 %v290, %v298
        %v300 = vmul.f32 %v291, %v298
        %s301 = sld [smem:[#allocation8]]
        %v302 = vstv %s301
        %vm303 = vcmask 261120
        %v305 = vsel %vm303, %v299, 0
        %v308 = vsel %vm303, %v300, 0
        %v311 = vsel %vm303, %v292, 0
        %v314 = vsel %vm303, %v293, 0
        %316 = vmatprep.subr.mxu0 0.0
        %317 = vmatpush1.xpose.msra.mxu0 %v311
        %318 = vmatprep.subr.mxu0 0.0
        %319 = vmatpush1.xpose.msra.mxu0 %v314
        %320 = vmatprep.subr.mxu0 0.0
        %321 = vmatpush1.xpose.msra.mxu0 0.0
        %322 = vmatprep.subr.mxu0 0.0
        %323 = vmatpush1.xpose.msra.mxu0 0.0
        %324 = vmatprep.subr.mxu0 0.0
        %325 = vmatpush1.xpose.msra.mxu0 0.0
        %326 = vmatprep.subr.mxu0 0.0
        %327 = vmatpush1.xpose.msra.mxu0 0.0
        %328 = vmatprep.subr.mxu0 0.0
        %329 = vmatpush1.xpose.msra.mxu0 0.0
        %330 = vmatprep.subr.mxu0 0.0
        %331 = vmatpush1.xpose.msra.mxu0 0.0
        %332 = vmatprep.subr.mxu0 0.0
        %333 = vmatpush1.xpose.msra.mxu0 0.0
        %334 = vmatprep.subr.mxu0 0.0
        %335 = vmatpush1.xpose.msra.mxu0 0.0
        %336 = vmatprep.subr.mxu0 0.0
        %337 = vmatpush1.xpose.msra.mxu0 0.0
        %338 = vmatprep.subr.mxu0 0.0
        %339 = vmatpush1.xpose.msra.mxu0 0.0
        %340 = vmatprep.subr.mxu0 0.0
        %341 = vmatpush1.xpose.msra.mxu0 0.0
        %342 = vmatprep.subr.mxu0 0.0
        %343 = vmatpush1.xpose.msra.mxu0 0.0
        %344 = vmatprep.subr.mxu0 0.0
        %345 = vmatpush1.xpose.msra.mxu0 0.0
        %346 = vmatprep.subr.mxu0 0.0
        %347 = vmatpush1.xpose.msra.mxu0 0.0
        %348 = vmatprep.subr.mxu0 0.0
        %349 = vmatpush1.xpose.msra.mxu0 0.0
        %350 = vmatprep.subr.mxu0 0.0
        %351 = vmatpush1.xpose.msra.mxu0 0.0
        %352 = vmatprep.subr.mxu0 0.0
        %353 = vmatpush1.xpose.msra.mxu0 0.0
        %354 = vmatprep.subr.mxu0 0.0
        %355 = vmatpush1.xpose.msra.mxu0 0.0
        %356 = vmatprep.subr.mxu0 0.0
        %357 = vmatpush1.xpose.msra.mxu0 0.0
        %358 = vmatprep.subr.mxu0 0.0
        %359 = vmatpush1.xpose.msra.mxu0 0.0
        %360 = vmatprep.subr.mxu0 0.0
        %361 = vmatpush1.xpose.msra.mxu0 0.0
        %362 = vmatprep.subr.mxu0 0.0
        %363 = vmatpush1.xpose.msra.mxu0 0.0
        %364 = vmatprep.subr.mxu0 0.0
        %365 = vmatpush1.xpose.msra.mxu0 0.0
        %366 = vmatprep.subr.mxu0 0.0
        %367 = vmatpush1.xpose.msra.mxu0 0.0
        %368 = vmatprep.subr.mxu0 0.0
        %369 = vmatpush1.xpose.msra.mxu0 0.0
        %370 = vmatprep.subr.mxu0 0.0
        %371 = vmatpush1.xpose.msra.mxu0 0.0
        %372 = vmatprep.subr.mxu0 0.0
        %373 = vmatpush1.xpose.msra.mxu0 0.0
        %374 = vmatprep.subr.mxu0 0.0
        %375 = vmatpush1.xpose.msra.mxu0 0.0
        %376 = vmatprep.subr.mxu0 0.0
        %377 = vmatpush1.xpose.msra.mxu0 0.0
        %378 = vmatprep.subr.mxu0 0.0
        %379 = vmatpush1.xpose.msra.mxu0 0.0
        %380 = vmatprep.mubr.f32.mxu0 0.0
        %381 = vmatmul.mubr.f32.gmra.mrb[0].mxu0 %v305
        %v382 = vpop.f32.mrb[0].mxu0
        %v383 = vadd.f32 %v302, %v382
        %v384 = vpop.f32.mrb[0].mxu0
        %385 = vmatprep.mubr.f32.mxu0 0.0
        %386 = vmatmul.mubr.f32.gmra.mrb[0].mxu0 %v308
        %v387 = vpop.f32.mrb[0].mxu0
        %v388 = vadd.f32 %v302, %v387
        %v389 = vpop.f32.mrb[0].mxu0
        %390 = vdwg.mxu0
        %vm391 = vcmask 130048
        %392 = vst.msk [vmem:[%s287] sm:$0xff] %vm391, %v383
        %393 = vst.msk [vmem:[%s287 + $0x8] sm:$0xff] %vm391, %v388
        %v394 = vld [vmem:[%s2 + $0x1] sm:$0x1]
        %v395 = vlaneseq
        %v396 = vshrl.u32 %v395, 7
        %v397 = vsub.s32 0, %v396
        %v398 = vrot.slane %v394, %v397
        %v399 = vmul.f32 %v290, %v398
        %v400 = vmul.f32 %v291, %v398
        %s401 = sld [smem:[#allocation8 + $0x1]]
        %v402 = vstv %s401
        %v404 = vsel %vm303, %v399, 0
        %v407 = vsel %vm303, %v400, 0
        %409 = vmatprep.subr.mxu0 0.0
        %410 = vmatpush1.xpose.msra.mxu0 %v311
        %411 = vmatprep.subr.mxu0 0.0
        %412 = vmatpush1.xpose.msra.mxu0 %v314
        %413 = vmatprep.subr.mxu0 0.0
        %414 = vmatpush1.xpose.msra.mxu0 0.0
        %415 = vmatprep.subr.mxu0 0.0
        %416 = vmatpush1.xpose.msra.mxu0 0.0
        %417 = vmatprep.subr.mxu0 0.0
        %418 = vmatpush1.xpose.msra.mxu0 0.0
        %419 = vmatprep.subr.mxu0 0.0
        %420 = vmatpush1.xpose.msra.mxu0 0.0
        %421 = vmatprep.subr.mxu0 0.0
        %422 = vmatpush1.xpose.msra.mxu0 0.0
        %423 = vmatprep.subr.mxu0 0.0
        %424 = vmatpush1.xpose.msra.mxu0 0.0
        %425 = vmatprep.subr.mxu0 0.0
        %426 = vmatpush1.xpose.msra.mxu0 0.0
        %427 = vmatprep.subr.mxu0 0.0
        %428 = vmatpush1.xpose.msra.mxu0 0.0
        %429 = vmatprep.subr.mxu0 0.0
        %430 = vmatpush1.xpose.msra.mxu0 0.0
        %431 = vmatprep.subr.mxu0 0.0
        %432 = vmatpush1.xpose.msra.mxu0 0.0
        %433 = vmatprep.subr.mxu0 0.0
        %434 = vmatpush1.xpose.msra.mxu0 0.0
        %435 = vmatprep.subr.mxu0 0.0
        %436 = vmatpush1.xpose.msra.mxu0 0.0
        %437 = vmatprep.subr.mxu0 0.0
        %438 = vmatpush1.xpose.msra.mxu0 0.0
        %439 = vmatprep.subr.mxu0 0.0
        %440 = vmatpush1.xpose.msra.mxu0 0.0
        %441 = vmatprep.subr.mxu0 0.0
        %442 = vmatpush1.xpose.msra.mxu0 0.0
        %443 = vmatprep.subr.mxu0 0.0
        %444 = vmatpush1.xpose.msra.mxu0 0.0
        %445 = vmatprep.subr.mxu0 0.0
        %446 = vmatpush1.xpose.msra.mxu0 0.0
        %447 = vmatprep.subr.mxu0 0.0
        %448 = vmatpush1.xpose.msra.mxu0 0.0
        %449 = vmatprep.subr.mxu0 0.0
        %450 = vmatpush1.xpose.msra.mxu0 0.0
        %451 = vmatprep.subr.mxu0 0.0
        %452 = vmatpush1.xpose.msra.mxu0 0.0
        %453 = vmatprep.subr.mxu0 0.0
        %454 = vmatpush1.xpose.msra.mxu0 0.0
        %455 = vmatprep.subr.mxu0 0.0
        %456 = vmatpush1.xpose.msra.mxu0 0.0
        %457 = vmatprep.subr.mxu0 0.0
        %458 = vmatpush1.xpose.msra.mxu0 0.0
        %459 = vmatprep.subr.mxu0 0.0
        %460 = vmatpush1.xpose.msra.mxu0 0.0
        %461 = vmatprep.subr.mxu0 0.0
        %462 = vmatpush1.xpose.msra.mxu0 0.0
        %463 = vmatprep.subr.mxu0 0.0
        %464 = vmatpush1.xpose.msra.mxu0 0.0
        %465 = vmatprep.subr.mxu0 0.0
        %466 = vmatpush1.xpose.msra.mxu0 0.0
        %467 = vmatprep.subr.mxu0 0.0
        %468 = vmatpush1.xpose.msra.mxu0 0.0
        %469 = vmatprep.subr.mxu0 0.0
        %470 = vmatpush1.xpose.msra.mxu0 0.0
        %471 = vmatprep.subr.mxu0 0.0
        %472 = vmatpush1.xpose.msra.mxu0 0.0
        %473 = vmatprep.mubr.f32.mxu0 0.0
        %474 = vmatmul.mubr.f32.gmra.mrb[0].mxu0 %v404
        %v475 = vpop.f32.mrb[0].mxu0
        %v476 = vadd.f32 %v402, %v475
        %v477 = vpop.f32.mrb[0].mxu0
        %478 = vmatprep.mubr.f32.mxu0 0.0
        %479 = vmatmul.mubr.f32.gmra.mrb[0].mxu0 %v407
        %v480 = vpop.f32.mrb[0].mxu0
        %v481 = vadd.f32 %v402, %v480
        %v482 = vpop.f32.mrb[0].mxu0
        %483 = vdwg.mxu0
        %s484 = scalar_lea.vmem %s287, 16 [#allocation9]
        %485 = vst.msk [vmem:[%s484] sm:$0xff] %vm391, %v476
        %486 = vst.msk [vmem:[%s484 + $0x8] sm:$0xff] %vm391, %v481
        %s487 = sand.u32 %s143, 1
        %s488 = scalar_lea.sflag [#allocation4], %s487
        %s489 = sand.u32 %s143, 1
        %s490 = smul.addr %s489, 32
        %s491 = scalar_lea.vmem [#allocation9], %s490
        // Predicated region
        $region49: #{tpu_custom_call.1} parent=35 // pred_check
          %p492 = pneg %p153
        $region50: #{tpu_custom_call.1} parent=35 // pred_check_branch
          %494 = sbr.rel (%p492) target = $region52
        $region51: #{tpu_custom_call.1} parent=35 // pred_region
          %s495 = smul.u32 2, %s30
          %s497 = ssub.s32 512, 512
          %498 = vsyncadd %s488, %s497
          %s499 = smul.addr %s29, 4
          %s500 = sadd.s32 %s495, %s499
          %s501 = smul.addr %s500, 128
          %s502 = scalar_lea.hbm %s4, %s501
          %s503 = sshll.u32 %s491, 4
          %s504 = int_to_ptr.vmem [resolvable:$true] %s503
          %509 = dma.vmem_to_hbm [thread:$0]  %s504, 512, %s502, %s488, 128, 128, 8
        $region52: #{tpu_custom_call.1} parent=35 // pred_fallthru
          _
      $region36: #{tpu_custom_call.1} parent=5 // pred_fallthru
        _
      %p510 = scmp.le.s32.totalorder 2, %s20
      // Predicated region
      $region53: #{tpu_custom_call.1} parent=5 // pred_check
        %p511 = pneg %p510
      $region54: #{tpu_custom_call.1} parent=5 // pred_check_branch
        %513 = sbr.rel (%p511) target = $region56
      $region55: #{tpu_custom_call.1} parent=5 // pred_region
        %s514 = ssub.s32 %s20, 2
        // Predicated region
        $region57: #{tpu_custom_call.1} parent=55 // pred_check
          %p515 = pneg %p159
        $region58: #{tpu_custom_call.1} parent=55 // pred_check_branch
          %517 = sbr.rel (%p515) target = $region60
        $region59: #{tpu_custom_call.1} parent=55 // pred_region
          %s518 = sand.u32 %s144, 1
          %s519 = scalar_lea.sflag [#allocation4], %s518
          %s520 = sand.u32 %s144, 1
          %s521 = smul.addr %s520, 32
          %s522 = scalar_lea.vmem [#allocation9], %s521
          %523 = dma.done %s519, 512
        $region60: #{tpu_custom_call.1} parent=55 // pred_fallthru
          _
      $region56: #{tpu_custom_call.1} parent=5 // pred_fallthru
        _
    $region6: #{tpu_custom_call.1} parent=1 // loop_footer
      %s24 = sadd.s32 1, %s20
    $region7: #{tpu_custom_call.1} parent=1 // loop_footer_branch
      %19 = sbr.rel target = $region3
    $region8: #{tpu_custom_call.1} parent=1 // loop_exit
      _
    %524 = vsyncpa [#allocation3], 1
    %s525 = scalar_lea.sflag [#allocation3], 1
    %526 = vsyncpa %s525, 1
    %527 = vsyncpa [#allocation7], 1
    %s528 = scalar_lea.sflag [#allocation7], 1
    %529 = vsyncpa %s528, 1
    %530 = vsyncpa [#allocation4], 1
    %s531 = scalar_lea.sflag [#allocation4], 1
    %532 = vsyncpa %s531, 1
    %533 = vsyncpa [#allocation5], 1
    %s534 = scalar_lea.sflag [#allocation5], 1
    %535 = vsyncpa %s534, 1

</llo_original>
